<compile_context>
chip_gen: v5e
topology: v5e:2x2
jax: 0.10.0
libtpu: 0.0.40
codegen_flags: <defaults>
</compile_context>

<pallas_src>
import functools

import jax
import jax.numpy as jnp
from jax import lax
from jax.experimental import pallas as pl
from jax.experimental.pallas import tpu as pltpu


def _round_up(x: int, m: int) -> int:
    return ((x + m - 1) // m) * m


def _pick_head_block(num_heads: int, head_dim: int, target_lanes: int = 256) -> int:
    """Smallest divisor Hb of num_heads with Hb*head_dim a multiple of 128 and
    >= target_lanes; falls back to all heads (block width == C, full dim)."""
    for hb in range(1, num_heads + 1):
        if num_heads % hb:
            continue
        width = hb * head_dim
        if width % 128 == 0 and width >= target_lanes:
            return hb
    return num_heads


# ---------------------------------------------------------------------------
# Kernel 1: fused per-(batch, head-block) QKV projection + attention core.
# ---------------------------------------------------------------------------
def _fused_qkv_attn_kernel(x_ref, w_ref, *rest, scale, hd, head_block, has_bias):
    # x_ref: (N, C)              current batch row (resident across head blocks)
    # w_ref: (num_hb, C, 3*G)    full QKV weight, bf16, VMEM-resident (G=Hb*hd)
    # b_ref: (num_hb, 1, 3*G)    optional bias (only when qkv_bias=True)
    # o_ref: (N, G)              lane-dense column slab of the (B, N, C) output
    if has_bias:
        b_ref, o_ref = rest
    else:
        b_ref = None
        (o_ref,) = rest

    hb = pl.program_id(1)
    G = head_block * hd

    x = x_ref[...].astype(jnp.bfloat16)                      # (N, C)
    w = w_ref[hb]                                            # (C, 3*G) bf16

    # One wide MXU pass for q|k|v of the whole head block.
    qkv = jnp.dot(x, w, preferred_element_type=jnp.float32)  # (N, 3*G) f32
    if b_ref is not None:
        qkv = qkv + b_ref[hb]                                # (1, 3*G) broadcast

    q = qkv[:, 0:G]
    k = qkv[:, G:2 * G]
    v = qkv[:, 2 * G:3 * G].astype(jnp.bfloat16)

    outs = []
    for j in range(head_block):                              # static unroll
        lo, hi = j * hd, (j + 1) * hd
        qj = (q[:, lo:hi] * scale).astype(jnp.bfloat16)      # (N, hd)
        kj = k[:, lo:hi].astype(jnp.bfloat16)                # (N, hd)
        # scores = q k^T (contract over head_dim, no explicit transpose).
        s = lax.dot_general(qj, kj, (((1,), (1,)), ((), ())),
                            preferred_element_type=jnp.float32)   # (N, N)
        m = jnp.max(s, axis=-1, keepdims=True)
        p = jnp.exp(s - m)
        l = jnp.sum(p, axis=-1, keepdims=True)
        # TODO(synk): attn_drop is identity for the default 0.0 ratio.
        o = jnp.dot(p.astype(jnp.bfloat16), v[:, lo:hi],
                    preferred_element_type=jnp.float32)           # (N, hd)
        # Deferred softmax normalization: EUP reciprocal + (N, hd) multiplies.
        outs.append(o * pl.reciprocal(l, approx=True))

    o_ref[...] = jnp.concatenate(outs, axis=-1).astype(o_ref.dtype)


def _fused_qkv_attention(x, w_blocks, b_blocks, *, scale, head_dim, head_block,
                         has_bias):
    """x: (B, N, C); w_blocks: (num_hb, C, 3*G); b_blocks: (num_hb, 1, 3*G)|None.

    Returns the attention context directly in (B, N, C) layout (bf16).
    """
    B, N, C = x.shape
    num_hb = w_blocks.shape[0]
    G = head_block * head_dim

    kernel = functools.partial(_fused_qkv_attn_kernel, scale=float(scale),
                               hd=head_dim, head_block=head_block,
                               has_bias=has_bias)

    in_specs = [
        # x tile: index map independent of the (inner) head-block axis -> the
        # (N, C) tile stays VMEM-resident across all head blocks of a row.
        pl.BlockSpec((None, N, C), lambda b, hb: (b, 0, 0)),
        # Full QKV weight with a constant index map -> DMA'd once, resident
        # across the entire grid (no per-batch re-streaming).
        pl.BlockSpec((num_hb, C, 3 * G), lambda b, hb: (0, 0, 0)),
    ]
    args = [x, w_blocks]
    if has_bias:
        in_specs.append(pl.BlockSpec((num_hb, 1, 3 * G), lambda b, hb: (0, 0, 0)))
        args.append(b_blocks)

    return pl.pallas_call(
        kernel,
        out_shape=jax.ShapeDtypeStruct((B, N, C), jnp.bfloat16),
        grid_spec=pltpu.PrefetchScalarGridSpec(
            num_scalar_prefetch=0,
            grid=(B, num_hb),          # B leading & parallel (v7x megacore)
            in_specs=in_specs,
            # Lane-dense column slab of the (B, N, C) output: no external
            # transpose between the attention core and the projection.
            out_specs=pl.BlockSpec((None, N, G), lambda b, hb: (b, 0, hb)),
        ),
        compiler_params=pltpu.CompilerParams(
            dimension_semantics=("parallel", "parallel")),
    )(*args)


# ---------------------------------------------------------------------------
# Kernel 2: output projection  y = x @ W + b  with a VMEM-resident weight.
# ---------------------------------------------------------------------------
def _proj_kernel(x_ref, w_ref, b_ref, o_ref):
    acc = jnp.dot(x_ref[...].astype(jnp.bfloat16), w_ref[...],
                  preferred_element_type=jnp.float32)
    o_ref[...] = (acc + b_ref[...]).astype(o_ref.dtype)


def _linear(x2d, w, b, *, tm=512, out_dtype=jnp.float32):
    """x2d: (M, K); w: (K, Nout) bf16; b: (Nout,) -> (M, Nout).

    Full-K contraction per step (no K grid axis); the weight uses a constant
    index_map so it stays VMEM-resident (~1.1 MB bf16 for ViT-B).  Row dim is
    padded to the tile size instead of falling back to a full-dim block.
    TODO(synk): tile over K/Nout as well if dims grow beyond a few thousand.
    """
    M, K = x2d.shape
    K2, Nout = w.shape
    assert K == K2
    tm = min(tm, _round_up(M, 8))
    M_pad = _round_up(M, tm)
    x_p = jnp.pad(x2d, ((0, M_pad - M), (0, 0))) if M_pad != M else x2d
    b2 = b.reshape(1, Nout).astype(jnp.float32)

    out = pl.pallas_call(
        _proj_kernel,
        out_shape=jax.ShapeDtypeStruct((M_pad, Nout), out_dtype),
        grid_spec=pltpu.PrefetchScalarGridSpec(
            num_scalar_prefetch=0,
            grid=(M_pad // tm,),
            in_specs=[
                pl.BlockSpec((tm, K), lambda i: (i, 0)),
                pl.BlockSpec((K, Nout), lambda i: (0, 0)),   # resident weight
                pl.BlockSpec((1, Nout), lambda i: (0, 0)),
            ],
            out_specs=pl.BlockSpec((tm, Nout), lambda i: (i, 0)),
        ),
        compiler_params=pltpu.CompilerParams(
            dimension_semantics=("parallel",)),
    )(x_p, w, b2)
    return out[:M] if M_pad != M else out


# ---------------------------------------------------------------------------
# Module wrapper (mirrors the PyTorch Attention module's forward pass).
# ---------------------------------------------------------------------------
class Attention:
    """Pallas/JAX port of the ViT multi-head self-attention module."""

    def __init__(self, dim, num_heads=8, qkv_bias=False, qk_scale=None,
                 attn_drop_ratio=0.0, proj_drop_ratio=0.0, *, key,
                 param_dtype=jnp.bfloat16, head_block_lanes=256):
        assert dim % num_heads == 0
        self.dim = dim
        self.num_heads = num_heads
        self.head_dim = dim // num_heads
        self.scale = qk_scale if qk_scale is not None else self.head_dim ** -0.5
        self.attn_drop_ratio = attn_drop_ratio
        self.proj_drop_ratio = proj_drop_ratio
        self.qkv_bias = qkv_bias

        k1, k2, k3 = jax.random.split(key, 3)
        # Weights stored already transposed to (in_features, out_features), in
        # bf16 for the MXU:  y = x @ W + b  (== torch's  x @ weight.T + bias).
        self.w_qkv = (0.2 * jax.random.normal(k1, (dim, 3 * dim))).astype(param_dtype)
        self.b_qkv = (0.1 * jax.random.normal(k3, (3 * dim,)).astype(jnp.float32)
                      if qkv_bias else jnp.zeros((3 * dim,), jnp.float32))
        self.w_proj = (0.2 * jax.random.normal(k2, (dim, dim))).astype(param_dtype)
        self.b_proj = jnp.zeros((dim,), jnp.float32)

        # Head-block layout for the fused kernel.
        H, hd = self.num_heads, self.head_dim
        self.head_block = _pick_head_block(H, hd, head_block_lanes)
        self.num_head_blocks = H // self.head_block
        Hb, nhb = self.head_block, self.num_head_blocks
        G = Hb * hd
        # (C, 3*C) -> (num_hb, C, 3*Hb*hd): per block, columns ordered (3, Hb, hd).
        self.w_qkv_blocks = (self.w_qkv.reshape(dim, 3, nhb, Hb, hd)
                             .transpose(2, 0, 1, 3, 4).reshape(nhb, dim, 3 * G))
        self.b_qkv_blocks = (self.b_qkv.reshape(3, nhb, Hb, hd)
                             .transpose(1, 0, 2, 3).reshape(nhb, 1, 3 * G)
                             if qkv_bias else None)

    def __call__(self, x):
        B, N, C = x.shape
        ctx = _fused_qkv_attention(
            x, self.w_qkv_blocks, self.b_qkv_blocks,
            scale=self.scale, head_dim=self.head_dim,
            head_block=self.head_block, has_bias=self.qkv_bias)   # (B, N, C) bf16
        out = _linear(ctx.reshape(B * N, C), self.w_proj, self.b_proj,
                      out_dtype=x.dtype)
        # TODO(synk): proj_drop is identity for the default 0.0 ratio.
        return out.reshape(B, N, C)


# ---------------------------------------------------------------------------
# Pure-JAX reference (mirrors the PyTorch forward exactly, f32).
# ---------------------------------------------------------------------------
def attention_reference(x, w_qkv, b_qkv, w_proj, b_proj, num_heads, scale):
    B, N, C = x.shape
    hd = C // num_heads
    with jax.default_matmul_precision("float32"):
        qkv = x.reshape(B * N, C) @ w_qkv + b_qkv
        qkv = qkv.reshape(B, N, 3, num_heads, hd).transpose(2, 0, 3, 1, 4)
        q, k, v = qkv[0], qkv[1], qkv[2]
        attn = (q @ jnp.swapaxes(k, -2, -1)) * scale
        attn = jax.nn.softmax(attn, axis=-1)
        out = (attn @ v).transpose(0, 2, 1, 3).reshape(B * N, C)
        out = out @ w_proj + b_proj
    return out.reshape(B, N, C)


def _check(module, x, atol=5e-2, rtol=5e-2):
    out = jax.block_until_ready(module(x))
    assert out.shape == x.shape
    ref = attention_reference(
        x, module.w_qkv.astype(jnp.float32), module.b_qkv,
        module.w_proj.astype(jnp.float32), module.b_proj,
        module.num_heads, module.scale)
    err = jnp.max(jnp.abs(out - ref))
    assert jnp.allclose(out, ref, atol=atol, rtol=rtol), (
        f"mismatch vs reference: max abs err = {err:.3e}")


if __name__ == "__main__":
    key = jax.random.PRNGKey(0)
    k_param, k_param2, k_x = jax.random.split(key, 3)

    # Small ViT-style shapes: batch=2, seq=8 tokens, hidden=32, heads=4 (hd=8).
    B, N, C, H = 2, 8, 32, 4
    x = jax.random.normal(k_x, (B, N, C), dtype=jnp.float32)

    # Default path (qkv_bias=False, bias input skipped entirely).
    _check(Attention(C, num_heads=H, qkv_bias=False, key=k_param), x)
    # Bias path (qkv_bias=True).
    _check(Attention(C, num_heads=H, qkv_bias=True, key=k_param2), x)

    print("KERNEL_OK")
</pallas_src>

<mosaic_0001>
module attributes {stable_mosaic.version = 11 : i64} {
  func.func @_fused_qkv_attn_kernel(%arg0: i32, %arg1: i32, %arg2: memref<1x8x32xf32, #tpu.memory_space<vmem>>, %arg3: memref<1x32x96xbf16, #tpu.memory_space<vmem>>, %arg4: memref<1x8x32xbf16, #tpu.memory_space<vmem>>) attributes {dimension_semantics = [#tpu.dimension_semantics<parallel>, #tpu.dimension_semantics<parallel>], iteration_bounds = array<i64: 2, 1>, scalar_prefetch = 0 : i64, scratch_operands = 0 : i64, tpu.core_type = #tpu.core_type<tc>, window_params = [{transform_indices = @transform_0, window_bounds = array<i64: 1, 8, 32>}, {pipeline_mode = #tpu.pipeline_mode<synchronous>, transform_indices = @transform_1, window_bounds = array<i64: 1, 32, 96>}, {transform_indices = @transform_2, window_bounds = array<i64: 1, 8, 32>}]} {
    %c0 = arith.constant 0 : index
    %c0_0 = arith.constant 0 : index
    %c0_1 = arith.constant 0 : index
    %0 = vector.load %arg2[%c0, %c0_0, %c0_1] : memref<1x8x32xf32, #tpu.memory_space<vmem>>, vector<1x8x32xf32>
    %1 = vector.shape_cast %0 : vector<1x8x32xf32> to vector<8x32xf32>
    %2 = arith.truncf %1 : vector<8x32xf32> to vector<8x32xbf16>
    %3 = arith.index_cast %arg1 : i32 to index
    %c0_2 = arith.constant 0 : index
    %c0_3 = arith.constant 0 : index
    %4 = vector.load %arg3[%3, %c0_2, %c0_3] : memref<1x32x96xbf16, #tpu.memory_space<vmem>>, vector<1x32x96xbf16>
    %5 = vector.shape_cast %4 : vector<1x32x96xbf16> to vector<32x96xbf16>
    %cst = arith.constant dense<0.000000e+00> : vector<8x96xf32>
    %6 = tpu.matmul %2, %5, %cst {dimension_numbers = #tpu.dot_dimension_numbers<[1], [0], [0], [1], [0, 0, 1, 1], [], []>} : vector<8x32xbf16>, vector<32x96xbf16>, vector<8x96xf32> -> vector<8x96xf32>
    %7 = vector.extract_strided_slice %6 {offsets = [0, 0], sizes = [8, 32], strides = [1, 1]} : vector<8x96xf32> to vector<8x32xf32>
    %8 = vector.extract_strided_slice %6 {offsets = [0, 32], sizes = [8, 32], strides = [1, 1]} : vector<8x96xf32> to vector<8x32xf32>
    %9 = vector.extract_strided_slice %6 {offsets = [0, 64], sizes = [8, 32], strides = [1, 1]} : vector<8x96xf32> to vector<8x32xf32>
    %10 = arith.truncf %9 : vector<8x32xf32> to vector<8x32xbf16>
    %11 = vector.extract_strided_slice %7 {offsets = [0, 0], sizes = [8, 8], strides = [1, 1]} : vector<8x32xf32> to vector<8x8xf32>
    %cst_4 = arith.constant 0.353553385 : f32
    %12 = vector.broadcast %cst_4 : f32 to vector<8x8xf32>
    %13 = arith.mulf %11, %12 : vector<8x8xf32>
    %14 = arith.truncf %13 : vector<8x8xf32> to vector<8x8xbf16>
    %15 = vector.extract_strided_slice %8 {offsets = [0, 0], sizes = [8, 8], strides = [1, 1]} : vector<8x32xf32> to vector<8x8xf32>
    %16 = arith.truncf %15 : vector<8x8xf32> to vector<8x8xbf16>
    %cst_5 = arith.constant dense<0.000000e+00> : vector<8x8xf32>
    %17 = tpu.matmul %14, %16, %cst_5 {dimension_numbers = #tpu.dot_dimension_numbers<[1], [1], [0], [0], [0, 0, 1, 0], [], []>} : vector<8x8xbf16>, vector<8x8xbf16>, vector<8x8xf32> -> vector<8x8xf32>
    %cst_6 = arith.constant dense<0xFF800000> : vector<8xf32>
    %18 = vector.multi_reduction <maximumf>, %17, %cst_6 [1] : vector<8x8xf32> to vector<8xf32>
    %19 = vector.shape_cast %18 : vector<8xf32> to vector<8x1xf32>
    %20 = vector.broadcast %19 : vector<8x1xf32> to vector<8x8xf32>
    %21 = arith.subf %17, %20 : vector<8x8xf32>
    %22 = math.exp %21 : vector<8x8xf32>
    %cst_7 = arith.constant dense<0.000000e+00> : vector<8xf32>
    %23 = vector.multi_reduction <add>, %22, %cst_7 [1] : vector<8x8xf32> to vector<8xf32>
    %24 = vector.shape_cast %23 : vector<8xf32> to vector<8x1xf32>
    %25 = arith.truncf %22 : vector<8x8xf32> to vector<8x8xbf16>
    %26 = vector.extract_strided_slice %10 {offsets = [0, 0], sizes = [8, 8], strides = [1, 1]} : vector<8x32xbf16> to vector<8x8xbf16>
    %cst_8 = arith.constant dense<0.000000e+00> : vector<8x8xf32>
    %27 = tpu.matmul %25, %26, %cst_8 {dimension_numbers = #tpu.dot_dimension_numbers<[1], [0], [0], [1], [0, 0, 1, 1], [], []>} : vector<8x8xbf16>, vector<8x8xbf16>, vector<8x8xf32> -> vector<8x8xf32>
    %28 = tpu.reciprocal %24 {approx = true} : vector<8x1xf32> -> vector<8x1xf32>
    %29 = vector.broadcast %28 : vector<8x1xf32> to vector<8x8xf32>
    %30 = arith.mulf %27, %29 : vector<8x8xf32>
    %31 = vector.extract_strided_slice %7 {offsets = [0, 8], sizes = [8, 8], strides = [1, 1]} : vector<8x32xf32> to vector<8x8xf32>
    %cst_9 = arith.constant 0.353553385 : f32
    %32 = vector.broadcast %cst_9 : f32 to vector<8x8xf32>
    %33 = arith.mulf %31, %32 : vector<8x8xf32>
    %34 = arith.truncf %33 : vector<8x8xf32> to vector<8x8xbf16>
    %35 = vector.extract_strided_slice %8 {offsets = [0, 8], sizes = [8, 8], strides = [1, 1]} : vector<8x32xf32> to vector<8x8xf32>
    %36 = arith.truncf %35 : vector<8x8xf32> to vector<8x8xbf16>
    %cst_10 = arith.constant dense<0.000000e+00> : vector<8x8xf32>
    %37 = tpu.matmul %34, %36, %cst_10 {dimension_numbers = #tpu.dot_dimension_numbers<[1], [1], [0], [0], [0, 0, 1, 0], [], []>} : vector<8x8xbf16>, vector<8x8xbf16>, vector<8x8xf32> -> vector<8x8xf32>
    %cst_11 = arith.constant dense<0xFF800000> : vector<8xf32>
    %38 = vector.multi_reduction <maximumf>, %37, %cst_11 [1] : vector<8x8xf32> to vector<8xf32>
    %39 = vector.shape_cast %38 : vector<8xf32> to vector<8x1xf32>
    %40 = vector.broadcast %39 : vector<8x1xf32> to vector<8x8xf32>
    %41 = arith.subf %37, %40 : vector<8x8xf32>
    %42 = math.exp %41 : vector<8x8xf32>
    %cst_12 = arith.constant dense<0.000000e+00> : vector<8xf32>
    %43 = vector.multi_reduction <add>, %42, %cst_12 [1] : vector<8x8xf32> to vector<8xf32>
    %44 = vector.shape_cast %43 : vector<8xf32> to vector<8x1xf32>
    %45 = arith.truncf %42 : vector<8x8xf32> to vector<8x8xbf16>
    %46 = vector.extract_strided_slice %10 {offsets = [0, 8], sizes = [8, 8], strides = [1, 1]} : vector<8x32xbf16> to vector<8x8xbf16>
    %cst_13 = arith.constant dense<0.000000e+00> : vector<8x8xf32>
    %47 = tpu.matmul %45, %46, %cst_13 {dimension_numbers = #tpu.dot_dimension_numbers<[1], [0], [0], [1], [0, 0, 1, 1], [], []>} : vector<8x8xbf16>, vector<8x8xbf16>, vector<8x8xf32> -> vector<8x8xf32>
    %48 = tpu.reciprocal %44 {approx = true} : vector<8x1xf32> -> vector<8x1xf32>
    %49 = vector.broadcast %48 : vector<8x1xf32> to vector<8x8xf32>
    %50 = arith.mulf %47, %49 : vector<8x8xf32>
    %51 = vector.extract_strided_slice %7 {offsets = [0, 16], sizes = [8, 8], strides = [1, 1]} : vector<8x32xf32> to vector<8x8xf32>
    %cst_14 = arith.constant 0.353553385 : f32
    %52 = vector.broadcast %cst_14 : f32 to vector<8x8xf32>
    %53 = arith.mulf %51, %52 : vector<8x8xf32>
    %54 = arith.truncf %53 : vector<8x8xf32> to vector<8x8xbf16>
    %55 = vector.extract_strided_slice %8 {offsets = [0, 16], sizes = [8, 8], strides = [1, 1]} : vector<8x32xf32> to vector<8x8xf32>
    %56 = arith.truncf %55 : vector<8x8xf32> to vector<8x8xbf16>
    %cst_15 = arith.constant dense<0.000000e+00> : vector<8x8xf32>
    %57 = tpu.matmul %54, %56, %cst_15 {dimension_numbers = #tpu.dot_dimension_numbers<[1], [1], [0], [0], [0, 0, 1, 0], [], []>} : vector<8x8xbf16>, vector<8x8xbf16>, vector<8x8xf32> -> vector<8x8xf32>
    %cst_16 = arith.constant dense<0xFF800000> : vector<8xf32>
    %58 = vector.multi_reduction <maximumf>, %57, %cst_16 [1] : vector<8x8xf32> to vector<8xf32>
    %59 = vector.shape_cast %58 : vector<8xf32> to vector<8x1xf32>
    %60 = vector.broadcast %59 : vector<8x1xf32> to vector<8x8xf32>
    %61 = arith.subf %57, %60 : vector<8x8xf32>
    %62 = math.exp %61 : vector<8x8xf32>
    %cst_17 = arith.constant dense<0.000000e+00> : vector<8xf32>
    %63 = vector.multi_reduction <add>, %62, %cst_17 [1] : vector<8x8xf32> to vector<8xf32>
    %64 = vector.shape_cast %63 : vector<8xf32> to vector<8x1xf32>
    %65 = arith.truncf %62 : vector<8x8xf32> to vector<8x8xbf16>
    %66 = vector.extract_strided_slice %10 {offsets = [0, 16], sizes = [8, 8], strides = [1, 1]} : vector<8x32xbf16> to vector<8x8xbf16>
    %cst_18 = arith.constant dense<0.000000e+00> : vector<8x8xf32>
    %67 = tpu.matmul %65, %66, %cst_18 {dimension_numbers = #tpu.dot_dimension_numbers<[1], [0], [0], [1], [0, 0, 1, 1], [], []>} : vector<8x8xbf16>, vector<8x8xbf16>, vector<8x8xf32> -> vector<8x8xf32>
    %68 = tpu.reciprocal %64 {approx = true} : vector<8x1xf32> -> vector<8x1xf32>
    %69 = vector.broadcast %68 : vector<8x1xf32> to vector<8x8xf32>
    %70 = arith.mulf %67, %69 : vector<8x8xf32>
    %71 = vector.extract_strided_slice %7 {offsets = [0, 24], sizes = [8, 8], strides = [1, 1]} : vector<8x32xf32> to vector<8x8xf32>
    %cst_19 = arith.constant 0.353553385 : f32
    %72 = vector.broadcast %cst_19 : f32 to vector<8x8xf32>
    %73 = arith.mulf %71, %72 : vector<8x8xf32>
    %74 = arith.truncf %73 : vector<8x8xf32> to vector<8x8xbf16>
    %75 = vector.extract_strided_slice %8 {offsets = [0, 24], sizes = [8, 8], strides = [1, 1]} : vector<8x32xf32> to vector<8x8xf32>
    %76 = arith.truncf %75 : vector<8x8xf32> to vector<8x8xbf16>
    %cst_20 = arith.constant dense<0.000000e+00> : vector<8x8xf32>
    %77 = tpu.matmul %74, %76, %cst_20 {dimension_numbers = #tpu.dot_dimension_numbers<[1], [1], [0], [0], [0, 0, 1, 0], [], []>} : vector<8x8xbf16>, vector<8x8xbf16>, vector<8x8xf32> -> vector<8x8xf32>
    %cst_21 = arith.constant dense<0xFF800000> : vector<8xf32>
    %78 = vector.multi_reduction <maximumf>, %77, %cst_21 [1] : vector<8x8xf32> to vector<8xf32>
    %79 = vector.shape_cast %78 : vector<8xf32> to vector<8x1xf32>
    %80 = vector.broadcast %79 : vector<8x1xf32> to vector<8x8xf32>
    %81 = arith.subf %77, %80 : vector<8x8xf32>
    %82 = math.exp %81 : vector<8x8xf32>
    %cst_22 = arith.constant dense<0.000000e+00> : vector<8xf32>
    %83 = vector.multi_reduction <add>, %82, %cst_22 [1] : vector<8x8xf32> to vector<8xf32>
    %84 = vector.shape_cast %83 : vector<8xf32> to vector<8x1xf32>
    %85 = arith.truncf %82 : vector<8x8xf32> to vector<8x8xbf16>
    %86 = vector.extract_strided_slice %10 {offsets = [0, 24], sizes = [8, 8], strides = [1, 1]} : vector<8x32xbf16> to vector<8x8xbf16>
    %cst_23 = arith.constant dense<0.000000e+00> : vector<8x8xf32>
    %87 = tpu.matmul %85, %86, %cst_23 {dimension_numbers = #tpu.dot_dimension_numbers<[1], [0], [0], [1], [0, 0, 1, 1], [], []>} : vector<8x8xbf16>, vector<8x8xbf16>, vector<8x8xf32> -> vector<8x8xf32>
    %88 = tpu.reciprocal %84 {approx = true} : vector<8x1xf32> -> vector<8x1xf32>
    %89 = vector.broadcast %88 : vector<8x1xf32> to vector<8x8xf32>
    %90 = arith.mulf %87, %89 : vector<8x8xf32>
    %91 = tpu.concatenate %30, %50, %70, %90 in 1 : vector<8x8xf32>, vector<8x8xf32>, vector<8x8xf32>, vector<8x8xf32> -> vector<8x32xf32>
    %92 = arith.truncf %91 : vector<8x32xf32> to vector<8x32xbf16>
    %c0_24 = arith.constant 0 : index
    %c0_25 = arith.constant 0 : index
    %c0_26 = arith.constant 0 : index
    %93 = vector.load %arg4[%c0_24, %c0_25, %c0_26] : memref<1x8x32xbf16, #tpu.memory_space<vmem>>, vector<1x8x32xbf16>
    %94 = vector.shape_cast %93 : vector<1x8x32xbf16> to vector<8x32xbf16>
    %95 = vector.shape_cast %92 : vector<8x32xbf16> to vector<1x8x32xbf16>
    tpu.vector_store %arg4[%c0_24, %c0_25, %c0_26], %95 {strides = array<i32>} : memref<1x8x32xbf16, #tpu.memory_space<vmem>>, vector<1x8x32xbf16>,
    return
  }
  func.func @transform_0(%arg0: i32, %arg1: i32) -> (i32, i32, i32) {
    %c0_i32 = arith.constant 0 : i32
    %c0_i32_0 = arith.constant 0 : i32
    %c0_i32_1 = arith.constant 0 : i32
    return %arg0, %c0_i32, %c0_i32_0 : i32, i32, i32
  }
  func.func @transform_1(%arg0: i32, %arg1: i32) -> (i32, i32, i32) {
    %c0_i32 = arith.constant 0 : i32
    %c0_i32_0 = arith.constant 0 : i32
    %c0_i32_1 = arith.constant 0 : i32
    %c0_i32_2 = arith.constant 0 : i32
    return %c0_i32, %c0_i32_0, %c0_i32_1 : i32, i32, i32
  }
  func.func @transform_2(%arg0: i32, %arg1: i32) -> (i32, i32, i32) {
    %c0_i32 = arith.constant 0 : i32
    %c0_i32_0 = arith.constant 0 : i32
    return %arg0, %c0_i32, %arg1 : i32, i32, i32
  }
}

</mosaic_0001>

<llo_original>
// kernel: tpu_custom_call.1
$region0: #{tpu_custom_call.1}
  #allocation0 [shape = 'u32[]', space=smem, size = 0x4, offset = 0x4, fixed_abs, tag = 'smem constant byte address 0x4 - core index']
  #allocation1 [shape = 'u32[72,128]{1,0:T(1,128)}', space=vmem, size = 0x9000, scoped, tag = 'internal scratch']
  %s0 = inlined_call_operand.hbm [shape: f32[2,8,32], index: 0, kind: input, shape index: {}]
  %s1 = inlined_call_operand.hbm [shape: bf16[1,32,96], index: 1, kind: input, shape index: {}]
  %s2 = inlined_call_operand.hbm [shape: bf16[2,8,32], index: 2, kind: output, shape index: {}]
  %s3 = sld [smem:[#allocation0]]
  $region49: #{tpu_custom_call.1} parent=0
    _
  %s5 = ssub.s32 1, %s3
  %s6 = scalar_select 0, %s5, %s3
  $region1: #{tpu_custom_call.1} parent=0
    #allocation2 [shape = 'u8[8192]{0}', space=vmem, size = 0x2000, scoped, tag = 'input window, operand 0']
    #allocation3 [shape = 's32[2]{0}', space=sflag, size = 0x8, scoped, tag = 'scoped memory for tpu_custom_call.1']
    #allocation4 [shape = 's32[2]{0}', space=sflag, size = 0x8, scoped, tag = 'scoped memory for tpu_custom_call.1']
    #allocation5 [shape = 'u8[8192]{0}', space=vmem, size = 0x2000, scoped, tag = 'input window, operand 1, single buffered']
    #allocation6 [shape = 's32[1]{0}', space=sflag, size = 0x4, scoped, tag = 'scoped memory for tpu_custom_call.1']
    #allocation7 [shape = 'u8[4096]{0}', space=vmem, size = 0x1000, scoped, tag = 'output window, operand 0']
    %7 = vsyncpa [#allocation3], 0
    %s8 = scalar_lea.sflag [#allocation3], 1
    %9 = vsyncpa %s8, 0
    %10 = vsyncpa [#allocation6], 0
    %11 = vsyncpa [#allocation4], 0
    %s12 = scalar_lea.sflag [#allocation4], 1
    %13 = vsyncpa %s12, 0
    loop: start=0, step=1, limit=4
    $region2: #{tpu_custom_call.1} parent=1 // loop_pre_header
      _
    $region3: #{tpu_custom_call.1} parent=1 // loop_header
      %s15 = sphi 0, %s19
      %p16 = scmp.ge.s32.totalorder %s15, 4
      %s22 = sphi 0, %s34
      %s23 = sphi 0, %s30
      %s24 = sphi 0, %s22
      %s25 = sphi 0, %s23
      %s26 = sphi 0, %s24
      %s27 = sphi 0, %s25
      %s37 = sphi 0, %s39
      %s40 = sphi 0, %s37
      %s41 = sphi 0, %s40
      %s57 = sphi 0, %s41
      %s61 = sphi 0, %s61
      %s63 = sphi 0, %s61
      %s64 = sphi 0, %s63
      %s78 = sphi 0, %s64
      %s86 = sphi 0, %s88
      %s89 = sphi 0, %s86
      %s90 = sphi 0, %s89
      %s106 = sphi 0, %s90
    $region4: #{tpu_custom_call.1} parent=1 // loop_header_branch
      %18 = sbr.rel (%p16) target = $region8
    $region5: #{tpu_custom_call.1} parent=1 // loop_body
      %s20 = ssub.s32 %s15, 1
      %s21 = ssub.s32 %s15, 2
      %s28 = sadd.s32 1, %s23
      %p29 = scmp.ge.s32.totalorder %s28, 1
      %s30 = scalar_select %p29, 0, %s28
      %s31 = sadd.s32 1, %s22
      %s32 = scalar_select %p29, %s31, %s22
      %p33 = scmp.ge.s32.totalorder %s32, 2
      %s34 = scalar_select %p33, 0, %s32
      %s35 = ssub.s32 %s22, %s34
      %p36 = scmp.eq.s32.totalorder %s35, 0
      %s38 = sadd.s32 %s37, 1
      %s39 = scalar_select %p36, %s37, %s38
      %p42 = pneg %p36
      %p43 = scmp.eq.s32.totalorder %s15, 1
      %p44 = por %p42, %p43
      %p45 = scmp.ne.s32.totalorder %s37, %s40
      %p46 = scmp.eq.s32.totalorder %s15, 0
      %p47 = por %p45, %p46
      %p48 = scmp.ne.s32.totalorder %s37, %s40
      %p49 = scmp.eq.s32.totalorder %s20, 1
      %p50 = por %p48, %p49
      %p51 = scmp.ne.s32.totalorder %s40, %s41
      %p52 = scmp.eq.s32.totalorder %s20, 0
      %p53 = por %p51, %p52
      %p54 = scmp.ne.s32.totalorder %s40, %s41
      %p55 = scmp.eq.s32.totalorder %s21, 1
      %p56 = por %p54, %p55
      %p58 = scmp.ne.s32.totalorder %s41, %s57
      %p59 = scmp.eq.s32.totalorder %s21, 0
      %p60 = por %p58, %p59
      %s62 = sadd.s32 %s61, 1
      %p65 = scmp.eq.s32.totalorder %s15, 1
      %p66 = scmp.ne.s32.totalorder %s61, %s63
      %p67 = scmp.eq.s32.totalorder %s15, 0
      %p68 = por %p66, %p67
      %p69 = scmp.ne.s32.totalorder %s61, %s63
      %p70 = scmp.eq.s32.totalorder %s20, 1
      %p71 = por %p69, %p70
      %p72 = scmp.ne.s32.totalorder %s63, %s64
      %p73 = scmp.eq.s32.totalorder %s20, 0
      %p74 = por %p72, %p73
      %p75 = scmp.ne.s32.totalorder %s63, %s64
      %p76 = scmp.eq.s32.totalorder %s21, 1
      %p77 = por %p75, %p76
      %p79 = scmp.ne.s32.totalorder %s64, %s78
      %p80 = scmp.eq.s32.totalorder %s21, 0
      %p81 = por %p79, %p80
      %s82 = ssub.s32 %s22, %s34
      %s83 = ssub.s32 %s23, %s30
      %s84 = sor.u32 %s82, %s83
      %p85 = scmp.eq.s32.totalorder %s84, 0
      %s87 = sadd.s32 %s86, 1
      %s88 = scalar_select %p85, %s86, %s87
      %p91 = pneg %p85
      %p92 = scmp.eq.s32.totalorder %s15, 1
      %p93 = por %p91, %p92
      %p94 = scmp.ne.s32.totalorder %s86, %s89
      %p95 = scmp.eq.s32.totalorder %s15, 0
      %p96 = por %p94, %p95
      %p97 = scmp.ne.s32.totalorder %s86, %s89
      %p98 = scmp.eq.s32.totalorder %s20, 1
      %p99 = por %p97, %p98
      %p100 = scmp.ne.s32.totalorder %s89, %s90
      %p101 = scmp.eq.s32.totalorder %s20, 0
      %p102 = por %p100, %p101
      %p103 = scmp.ne.s32.totalorder %s89, %s90
      %p104 = scmp.eq.s32.totalorder %s21, 1
      %p105 = por %p103, %p104
      %p107 = scmp.ne.s32.totalorder %s90, %s106
      %p108 = scmp.eq.s32.totalorder %s21, 0
      %p109 = por %p107, %p108
      %p110 = scmp.le.s32.totalorder 1, %s15
      %p111 = scmp.lt.s32.totalorder %s15, 3
      %p112 = pnand %p110, %p111
      %p113 = pneg %p112
      // Predicated region
      $region9: #{tpu_custom_call.1} parent=5 // pred_check
        _
      $region10: #{tpu_custom_call.1} parent=5 // pred_check_branch
        %115 = sbr.rel (%p112) target = $region12
      $region11: #{tpu_custom_call.1} parent=5 // pred_region
        %s116 = ssub.s32 %s15, 1
        // Predicated region
        $region13: #{tpu_custom_call.1} parent=11 // pred_check
          %p117 = pneg %p74
        $region14: #{tpu_custom_call.1} parent=11 // pred_check_branch
          %119 = sbr.rel (%p117) target = $region16
        $region15: #{tpu_custom_call.1} parent=11 // pred_region
          %121 = vsyncadd [#allocation6], 0
          %s122 = sshll.u32 %s1, 4
          %s123 = int_to_ptr.hbm [resolvable:$true] %s122
          %s124 = sshll.u32 [#allocation5], 4
          %s125 = int_to_ptr.vmem [resolvable:$true] %s124
          %130 = dma.hbm_to_vmem [thread:$0]  %s123, 256, %s125, [#allocation6], 64, 64, 4
        $region16: #{tpu_custom_call.1} parent=11 // pred_fallthru
          _
      $region12: #{tpu_custom_call.1} parent=5 // pred_fallthru
        _
      %p131 = scmp.lt.s32.totalorder %s15, 2
      // Predicated region
      $region17: #{tpu_custom_call.1} parent=5 // pred_check
        %p132 = pneg %p131
      $region18: #{tpu_custom_call.1} parent=5 // pred_check_branch
        %134 = sbr.rel (%p132) target = $region20
      $region19: #{tpu_custom_call.1} parent=5 // pred_region
        // Predicated region
        $region21: #{tpu_custom_call.1} parent=19 // pred_check
          %p135 = pneg %p47
        $region22: #{tpu_custom_call.1} parent=19 // pred_check_branch
          %137 = sbr.rel (%p135) target = $region24
        $region23: #{tpu_custom_call.1} parent=19 // pred_region
          %s138 = sand.u32 %s37, 1
          %s139 = scalar_lea.sflag [#allocation3], %s138
          %s140 = sand.u32 %s37, 1
          %s141 = smul.addr %s140, 8
          %s142 = scalar_lea.vmem [#allocation2], %s141
          %144 = vsyncadd %s139, 0
          %s145 = smul.addr %s22, 8
          %s146 = scalar_lea.hbm %s0, %s145
          %s148 = sshll.u32 %s146, 4
          %s149 = int_to_ptr.hbm [resolvable:$true] %s148
          %s150 = sshll.u32 %s142, 4
          %s151 = int_to_ptr.vmem [resolvable:$true] %s150
          %153 = dma.hbm_to_vmem [thread:$0]  %s149, 128, %s151, %s139
        $region24: #{tpu_custom_call.1} parent=19 // pred_fallthru
          _
      $region20: #{tpu_custom_call.1} parent=5 // pred_fallthru
        _
      %p154 = scmp.le.s32.totalorder 1, %s15
      %p155 = scmp.lt.s32.totalorder %s15, 3
      %p156 = pnand %p154, %p155
      %p157 = pneg %p156
      // Predicated region
      $region25: #{tpu_custom_call.1} parent=5 // pred_check
        _
      $region26: #{tpu_custom_call.1} parent=5 // pred_check_branch
        %159 = sbr.rel (%p156) target = $region28
      $region27: #{tpu_custom_call.1} parent=5 // pred_region
        %s160 = ssub.s32 %s15, 1
        %s161 = sand.u32 %s40, 1
        %s162 = scalar_lea.sflag [#allocation3], %s161
        %s163 = sand.u32 %s40, 1
        %s164 = smul.addr %s163, 8
        %s165 = scalar_lea.vmem [#allocation2], %s164
        // Predicated region
        $region29: #{tpu_custom_call.1} parent=27 // pred_check
          %p166 = pneg %p53
        $region30: #{tpu_custom_call.1} parent=27 // pred_check_branch
          %168 = sbr.rel (%p166) target = $region32
        $region31: #{tpu_custom_call.1} parent=27 // pred_region
          %170 = dma.done %s162, 128
        $region32: #{tpu_custom_call.1} parent=27 // pred_fallthru
          _
        // Predicated region
        $region33: #{tpu_custom_call.1} parent=27 // pred_check
          %p171 = pneg %p74
        $region34: #{tpu_custom_call.1} parent=27 // pred_check_branch
          %173 = sbr.rel (%p171) target = $region36
        $region35: #{tpu_custom_call.1} parent=27 // pred_region
          %175 = dma.done [#allocation6], 256
        $region36: #{tpu_custom_call.1} parent=27 // pred_fallthru
          _
        %s176 = sand.u32 %s40, 1
        %s177 = scalar_lea.sflag [#allocation3], %s176
        %s178 = sand.u32 %s40, 1
        %s179 = smul.addr %s178, 8
        %s180 = scalar_lea.vmem [#allocation2], %s179
        %p181 = pneg %p53
        %p182 = pneg %p50
        %p183 = pneg %p74
        %p184 = pneg %p71
        %p185 = pneg %p102
        %p186 = pneg %p99
        %s187 = sand.u32 %s89, 1
        %s188 = scalar_lea.sflag [#allocation4], %s187
        %s189 = sand.u32 %s89, 1
        %s190 = smul.addr %s189, 4
        %s191 = scalar_lea.vmem [#allocation7], %s190
        %v193 = vld [vmem:[%s165] sm:$0xff]
        %v194 = vpack.c.bf16 %v193, %v193
        %s195 = smul.u32 %s25, 4
        %s196 = smul.addr %s195, 4
        %s197 = scalar_lea.vmem [#allocation5], %s196
        %v198 = vld [vmem:[%s197] sm:$0xf]
        %v199 = vld [vmem:[%s197 + $0x4] sm:$0xf]
        %v200 = vld [vmem:[%s197 + $0x8] sm:$0xf]
        %v201 = vld [vmem:[%s197 + $0xc] sm:$0xf]
        %v206 = vunpack.c.l.b16 %v198
        %v207 = vunpack.c.l.b16 %v199
        %v208 = vunpack.c.l.b16 %v200
        %v209 = vunpack.c.l.b16 %v201
        %v210 = vpack.c.b16 %v207, %v206
        %v211 = vpack.c.b16 %v209, %v208
        %vm214 = vcmask 261120
        %v216 = vsel %vm214, %v194, 0
        %218 = vmatpush.bf16.msra.mxu0 0
        %219 = vmatpush.bf16.msra.mxu0 0
        %220 = vmatpush.bf16.msra.mxu0 0
        %221 = vmatpush.bf16.msra.mxu0 0
        %222 = vmatpush.bf16.msra.mxu0 0
        %223 = vmatpush.bf16.msra.mxu0 0
        %224 = vmatpush.bf16.msra.mxu0 %v211
        %225 = vmatpush.bf16.msra.mxu0 %v210
        %226 = vmatmul.bf16.gmra.mxu0 %v216
        %v227 = vpop.f32.mrf.mxu0
        %v228 = vadd.f32 0.0, %v227
        %v229 = vpop.f32.mrf.mxu0
        %230 = vdwg.mxu0
        %v231 = vpack.c.bf16 %v228, %v228
        %v232 = vmul.f32 %v228, 0.35355338
        %v233 = vpack.c.bf16 %v232, %v232
        %235 = vrot.lane.b32.xlu0 %v231, 96
        %v236 = vpop.permute.xlu0 %235
        %vm237 = vcmask 64512
        %v239 = vsel %vm237, %v233, 0
        %v242 = vsel %vm237, %v236, 0
        %244 = vmatpush.bf16.xpose.msra.mxu0 0
        %245 = vmatpush.bf16.xpose.msra.mxu0 0
        %246 = vmatpush.bf16.xpose.msra.mxu0 0
        %247 = vmatpush.bf16.xpose.msra.mxu0 0
        %248 = vmatpush.bf16.xpose.msra.mxu0 0
        %249 = vmatpush.bf16.xpose.msra.mxu0 0
        %250 = vmatpush.bf16.xpose.msra.mxu0 0
        %251 = vmatpush.bf16.xpose.msra.mxu0 %v242
        %252 = vmatmul.bf16.gmra.mxu0 %v239
        %v253 = vpop.f32.mrf.mxu0
        %v254 = vadd.f32 0.0, %v253
        %v255 = vpop.f32.mrf.mxu0
        %256 = vdwg.mxu0
        %v257 = vsel %vm237, %v254, -inf
        %258 = vmax.xlane.f32.xlu0 %v257
        %v259 = vpop.xlane.xlu0 %258
        %v260 = vsub.f32 %v254, %v259
        %v261 = vmul.f32 %v260, 1.442695
        %v262 = vpow.pop %v261
        %v263 = vsel %vm237, %v262, 0.0
        %264 = vadd.xlane.f32.xlu0 %v263
        %v265 = vpop.xlane.xlu0 %264
        %v266 = vpack.c.bf16 %v262, %v262
        %v267 = vunpack.c.l.b16 %v231
        %v268 = vpack.c.b16 %v267, %v267
        %269 = vrot.lane.b32.xlu0 %v268, 64
        %v270 = vpop.permute.xlu0 %269
        %v272 = vsel %vm237, %v266, 0
        %vm274 = vcmask 1043456
        %v276 = vsel %vm274, %v270, 0
        %278 = vmatpush.bf16.msra.mxu0 0
        %279 = vmatpush.bf16.msra.mxu0 0
        %280 = vmatpush.bf16.msra.mxu0 0
        %281 = vmatpush.bf16.msra.mxu0 0
        %282 = vmatpush.bf16.msra.mxu0 0
        %283 = vmatpush.bf16.msra.mxu0 0
        %284 = vmatpush.bf16.msra.mxu0 0
        %285 = vmatpush.bf16.msra.mxu0 %v276
        %286 = vmatmul.bf16.gmra.mxu0 %v272
        %v287 = vpop.f32.mrf.mxu0
        %v288 = vadd.f32 0.0, %v287
        %v289 = vpop.f32.mrf.mxu0
        %290 = vdwg.mxu0
        %v291 = vrcp.pop %v265
        %v292 = vmul.f32 %v288, %v291
        %294 = vrot.lane.b32.xlu0 %v233, 120
        %v295 = vpop.permute.xlu0 %294
        %296 = vrot.lane.b32.xlu0 %v231, 88
        %v297 = vpop.permute.xlu0 %296
        %v299 = vsel %vm237, %v295, 0
        %v302 = vsel %vm237, %v297, 0
        %304 = vmatpush.bf16.xpose.msra.mxu0 0
        %305 = vmatpush.bf16.xpose.msra.mxu0 0
        %306 = vmatpush.bf16.xpose.msra.mxu0 0
        %307 = vmatpush.bf16.xpose.msra.mxu0 0
        %308 = vmatpush.bf16.xpose.msra.mxu0 0
        %309 = vmatpush.bf16.xpose.msra.mxu0 0
        %310 = vmatpush.bf16.xpose.msra.mxu0 0
        %311 = vmatpush.bf16.xpose.msra.mxu0 %v302
        %312 = vmatmul.bf16.gmra.mxu0 %v299
        %v313 = vpop.f32.mrf.mxu0
        %v314 = vadd.f32 0.0, %v313
        %v315 = vpop.f32.mrf.mxu0
        %316 = vdwg.mxu0
        %v317 = vsel %vm237, %v314, -inf
        %318 = vmax.xlane.f32.xlu0 %v317
        %v319 = vpop.xlane.xlu0 %318
        %v320 = vsub.f32 %v314, %v319
        %v321 = vmul.f32 %v320, 1.442695
        %v322 = vpow.pop %v321
        %v323 = vsel %vm237, %v322, 0.0
        %324 = vadd.xlane.f32.xlu0 %v323
        %v325 = vpop.xlane.xlu0 %324
        %v326 = vpack.c.bf16 %v322, %v322
        %327 = vrot.lane.b32.xlu0 %v268, 56
        %v328 = vpop.permute.xlu0 %327
        %v330 = vsel %vm237, %v326, 0
        %v333 = vsel %vm274, %v328, 0
        %335 = vmatpush.bf16.msra.mxu0 0
        %336 = vmatpush.bf16.msra.mxu0 0
        %337 = vmatpush.bf16.msra.mxu0 0
        %338 = vmatpush.bf16.msra.mxu0 0
        %339 = vmatpush.bf16.msra.mxu0 0
        %340 = vmatpush.bf16.msra.mxu0 0
        %341 = vmatpush.bf16.msra.mxu0 0
        %342 = vmatpush.bf16.msra.mxu0 %v333
        %343 = vmatmul.bf16.gmra.mxu0 %v330
        %v344 = vpop.f32.mrf.mxu0
        %v345 = vadd.f32 0.0, %v344
        %v346 = vpop.f32.mrf.mxu0
        %347 = vdwg.mxu0
        %v348 = vrcp.pop %v325
        %v349 = vmul.f32 %v345, %v348
        %350 = vrot.lane.b32.xlu0 %v233, 112
        %v351 = vpop.permute.xlu0 %350
        %352 = vrot.lane.b32.xlu0 %v231, 80
        %v353 = vpop.permute.xlu0 %352
        %v355 = vsel %vm237, %v351, 0
        %v358 = vsel %vm237, %v353, 0
        %360 = vmatpush.bf16.xpose.msra.mxu0 0
        %361 = vmatpush.bf16.xpose.msra.mxu0 0
        %362 = vmatpush.bf16.xpose.msra.mxu0 0
        %363 = vmatpush.bf16.xpose.msra.mxu0 0
        %364 = vmatpush.bf16.xpose.msra.mxu0 0
        %365 = vmatpush.bf16.xpose.msra.mxu0 0
        %366 = vmatpush.bf16.xpose.msra.mxu0 0
        %367 = vmatpush.bf16.xpose.msra.mxu0 %v358
        %368 = vmatmul.bf16.gmra.mxu0 %v355
        %v369 = vpop.f32.mrf.mxu0
        %v370 = vadd.f32 0.0, %v369
        %v371 = vpop.f32.mrf.mxu0
        %372 = vdwg.mxu0
        %v373 = vsel %vm237, %v370, -inf
        %374 = vmax.xlane.f32.xlu0 %v373
        %v375 = vpop.xlane.xlu0 %374
        %v376 = vsub.f32 %v370, %v375
        %v377 = vmul.f32 %v376, 1.442695
        %v378 = vpow.pop %v377
        %v379 = vsel %vm237, %v378, 0.0
        %380 = vadd.xlane.f32.xlu0 %v379
        %v381 = vpop.xlane.xlu0 %380
        %v382 = vpack.c.bf16 %v378, %v378
        %383 = vrot.lane.b32.xlu0 %v268, 48
        %v384 = vpop.permute.xlu0 %383
        %v386 = vsel %vm237, %v382, 0
        %v389 = vsel %vm274, %v384, 0
        %391 = vmatpush.bf16.msra.mxu0 0
        %392 = vmatpush.bf16.msra.mxu0 0
        %393 = vmatpush.bf16.msra.mxu0 0
        %394 = vmatpush.bf16.msra.mxu0 0
        %395 = vmatpush.bf16.msra.mxu0 0
        %396 = vmatpush.bf16.msra.mxu0 0
        %397 = vmatpush.bf16.msra.mxu0 0
        %398 = vmatpush.bf16.msra.mxu0 %v389
        %399 = vmatmul.bf16.gmra.mxu0 %v386
        %v400 = vpop.f32.mrf.mxu0
        %v401 = vadd.f32 0.0, %v400
        %v402 = vpop.f32.mrf.mxu0
        %403 = vdwg.mxu0
        %v404 = vrcp.pop %v381
        %v405 = vmul.f32 %v401, %v404
        %406 = vrot.lane.b32.xlu0 %v233, 104
        %v407 = vpop.permute.xlu0 %406
        %408 = vrot.lane.b32.xlu0 %v231, 72
        %v409 = vpop.permute.xlu0 %408
        %v411 = vsel %vm237, %v407, 0
        %v414 = vsel %vm237, %v409, 0
        %416 = vmatpush.bf16.xpose.msra.mxu0 0
        %417 = vmatpush.bf16.xpose.msra.mxu0 0
        %418 = vmatpush.bf16.xpose.msra.mxu0 0
        %419 = vmatpush.bf16.xpose.msra.mxu0 0
        %420 = vmatpush.bf16.xpose.msra.mxu0 0
        %421 = vmatpush.bf16.xpose.msra.mxu0 0
        %422 = vmatpush.bf16.xpose.msra.mxu0 0
        %423 = vmatpush.bf16.xpose.msra.mxu0 %v414
        %424 = vmatmul.bf16.gmra.mxu0 %v411
        %v425 = vpop.f32.mrf.mxu0
        %v426 = vadd.f32 0.0, %v425
        %v427 = vpop.f32.mrf.mxu0
        %428 = vdwg.mxu0
        %v429 = vsel %vm237, %v426, -inf
        %430 = vmax.xlane.f32.xlu0 %v429
        %v431 = vpop.xlane.xlu0 %430
        %v432 = vsub.f32 %v426, %v431
        %v433 = vmul.f32 %v432, 1.442695
        %v434 = vpow.pop %v433
        %v435 = vsel %vm237, %v434, 0.0
        %436 = vadd.xlane.f32.xlu0 %v435
        %v437 = vpop.xlane.xlu0 %436
        %v438 = vpack.c.bf16 %v434, %v434
        %439 = vrot.lane.b32.xlu0 %v268, 40
        %v440 = vpop.permute.xlu0 %439
        %v442 = vsel %vm237, %v438, 0
        %v445 = vsel %vm274, %v440, 0
        %447 = vmatpush.bf16.msra.mxu0 0
        %448 = vmatpush.bf16.msra.mxu0 0
        %449 = vmatpush.bf16.msra.mxu0 0
        %450 = vmatpush.bf16.msra.mxu0 0
        %451 = vmatpush.bf16.msra.mxu0 0
        %452 = vmatpush.bf16.msra.mxu0 0
        %453 = vmatpush.bf16.msra.mxu0 0
        %454 = vmatpush.bf16.msra.mxu0 %v445
        %455 = vmatmul.bf16.gmra.mxu0 %v442
        %v456 = vpop.f32.mrf.mxu0
        %v457 = vadd.f32 0.0, %v456
        %v458 = vpop.f32.mrf.mxu0
        %459 = vdwg.mxu0
        %v460 = vrcp.pop %v437
        %v461 = vmul.f32 %v457, %v460
        %463 = vrot.lane.b32.xlu0 %v349, 8
        %v464 = vpop.permute.xlu0 %463
        %467 = vrot.lane.b32.xlu0 %v405, 16
        %v468 = vpop.permute.xlu0 %467
        %471 = vrot.lane.b32.xlu0 %v461, 24
        %v472 = vpop.permute.xlu0 %471
        %v474 = vsel %vm237, %v292, %v464
        %vm475 = vcmask 130048
        %v476 = vsel %vm475, %v474, %v468
        %vm477 = vcmask 195584
        %v478 = vsel %vm477, %v476, %v472
        %v479 = vpack.c.bf16 %v478, %v478
        %vm480 = vcmask 257024
        %481 = vst.msk [vmem:[%s191] sm:$0xf] %vm480, %v479
        %s482 = sand.u32 %s89, 1
        %s483 = scalar_lea.sflag [#allocation4], %s482
        %s484 = sand.u32 %s89, 1
        %s485 = smul.addr %s484, 4
        %s486 = scalar_lea.vmem [#allocation7], %s485
        // Predicated region
        $region37: #{tpu_custom_call.1} parent=27 // pred_check
          %p487 = pneg %p99
        $region38: #{tpu_custom_call.1} parent=27 // pred_check_branch
          %489 = sbr.rel (%p487) target = $region40
        $region39: #{tpu_custom_call.1} parent=27 // pred_region
          %491 = vsyncadd %s483, 0
          %s492 = sadd.s32 %s25, %s24
          %s493 = smul.addr %s492, 4
          %s494 = scalar_lea.hbm %s2, %s493
          %s496 = sshll.u32 %s486, 4
          %s497 = int_to_ptr.vmem [resolvable:$true] %s496
          %s498 = sshll.u32 %s494, 4
          %s499 = int_to_ptr.hbm [resolvable:$true] %s498
          %501 = dma.vmem_to_hbm [thread:$0]  %s497, 64, %s499, %s483
        $region40: #{tpu_custom_call.1} parent=27 // pred_fallthru
          _
      $region28: #{tpu_custom_call.1} parent=5 // pred_fallthru
        _
      %p502 = scmp.le.s32.totalorder 2, %s15
      // Predicated region
      $region41: #{tpu_custom_call.1} parent=5 // pred_check
        %p503 = pneg %p502
      $region42: #{tpu_custom_call.1} parent=5 // pred_check_branch
        %505 = sbr.rel (%p503) target = $region44
      $region43: #{tpu_custom_call.1} parent=5 // pred_region
        %s506 = ssub.s32 %s15, 2
        // Predicated region
        $region45: #{tpu_custom_call.1} parent=43 // pred_check
          %p507 = pneg %p105
        $region46: #{tpu_custom_call.1} parent=43 // pred_check_branch
          %509 = sbr.rel (%p507) target = $region48
        $region47: #{tpu_custom_call.1} parent=43 // pred_region
          %s510 = sand.u32 %s90, 1
          %s511 = scalar_lea.sflag [#allocation4], %s510
          %s512 = sand.u32 %s90, 1
          %s513 = smul.addr %s512, 4
          %s514 = scalar_lea.vmem [#allocation7], %s513
          %516 = dma.done %s511, 64
        $region48: #{tpu_custom_call.1} parent=43 // pred_fallthru
          _
      $region44: #{tpu_custom_call.1} parent=5 // pred_fallthru
        _
    $region6: #{tpu_custom_call.1} parent=1 // loop_footer
      %s19 = sadd.s32 1, %s15
    $region7: #{tpu_custom_call.1} parent=1 // loop_footer_branch
      %14 = sbr.rel target = $region3
    $region8: #{tpu_custom_call.1} parent=1 // loop_exit
      _
    %517 = vsyncpa [#allocation3], 1
    %s518 = scalar_lea.sflag [#allocation3], 1
    %519 = vsyncpa %s518, 1
    %520 = vsyncpa [#allocation6], 1
    %521 = vsyncpa [#allocation4], 1
    %s522 = scalar_lea.sflag [#allocation4], 1
    %523 = vsyncpa %s522, 1

</llo_original>
